<compile_context>
chip_gen: v5e
topology: v5e:2x2
jax: 0.10.0
libtpu: 0.0.40
codegen_flags: <defaults>
</compile_context>

<pallas_src>
import functools

import jax
import jax.numpy as jnp
from jax.experimental import pallas as pl
from jax.experimental.pallas import tpu as pltpu

LANES = 128            # vreg lane width: last dim of every block
MAX_CHUNK_ROWS = 1024  # sublane rows per grid step (13 f32 channels ≈ 6.8 MiB/step,
                       # ~13.6 MiB double-buffered + small scratch: fits the 40 MiB
                       # scoped VMEM limit below on v5e/v6e/v7x)


def _loss_kernel(gt_s_ref, pred_s_ref, ign_ref, gt_geo_ref, pred_geo_ref,
                 out_ref, acc_ref, *, chunk_rows, padded_rows,
                 chunks_per_split, apply_row_mask):
    # acc_ref : VMEM f32[5, 8, 128] persistent per-core accumulator:
    #   [0] gt_score
    #   [1] pred_score*(1-ignored) * gt_score   (dice intersection)
    #   [2] pred_score*(1-ignored)              (dice "inputs" sum)
    #   [3] angle_loss_map * gt_score
    #   [4] iou_loss_map   * gt_score
    # out_ref : f32[1, 1, 5, 128] per-(batch, split) lane-partial sums, written
    #           on the last chunk only (final cross-lane reduce is done in JAX).
    s = pl.program_id(1)
    c = pl.program_id(2)

    @pl.when(c == 0)
    def _():
        acc_ref[...] = jnp.zeros_like(acc_ref)

    gt = gt_s_ref[0].astype(jnp.float32)      # (chunk_rows, 128)
    ps = pred_s_ref[0].astype(jnp.float32)
    ig = ign_ref[0].astype(jnp.float32)

    # DiceLoss inputs: pred_score * (1 - ignored_map)
    dice_in = ps * (1.0 - ig)

    # Per-channel reads keep the elementwise chain fused in vregs (no big
    # (5, R, 128) f32 temporaries from a whole-block cast).
    d1_gt = gt_geo_ref[0, 0].astype(jnp.float32)
    d2_gt = gt_geo_ref[0, 1].astype(jnp.float32)
    d3_gt = gt_geo_ref[0, 2].astype(jnp.float32)
    d4_gt = gt_geo_ref[0, 3].astype(jnp.float32)
    ang_gt = gt_geo_ref[0, 4].astype(jnp.float32)
    d1_p = pred_geo_ref[0, 0].astype(jnp.float32)
    d2_p = pred_geo_ref[0, 1].astype(jnp.float32)
    d3_p = pred_geo_ref[0, 2].astype(jnp.float32)
    d4_p = pred_geo_ref[0, 3].astype(jnp.float32)
    ang_p = pred_geo_ref[0, 4].astype(jnp.float32)

    area_gt = (d1_gt + d2_gt) * (d3_gt + d4_gt)
    area_pred = (d1_p + d2_p) * (d3_p + d4_p)
    w_union = jnp.minimum(d3_gt, d3_p) + jnp.minimum(d4_gt, d4_p)
    h_union = jnp.minimum(d1_gt, d1_p) + jnp.minimum(d2_gt, d2_p)
    area_intersect = w_union * h_union
    area_union = area_gt + area_pred - area_intersect
    iou_loss_map = -jnp.log((area_intersect + 1.0) / (area_union + 1.0))
    angle_loss_map = 1.0 - jnp.cos(ang_p - ang_gt)

    if apply_row_mask:
        # The tail chunk extends past the array's row extent; those rows are
        # undefined (Pallas boundary block), so mask them out.  Using where()
        # (select, not multiply) also neutralizes NaN/Inf from garbage geo.
        valid = padded_rows - (s * chunks_per_split + c) * chunk_rows
        row_id = jax.lax.broadcasted_iota(jnp.int32, (chunk_rows, LANES), 0)
        keep = row_id < valid
        zero = jnp.float32(0.0)
        gt = jnp.where(keep, gt, zero)
        dice_in = jnp.where(keep, dice_in, zero)
        iou_loss_map = jnp.where(keep, iou_loss_map, zero)
        angle_loss_map = jnp.where(keep, angle_loss_map, zero)

    def fold(x):
        # (chunk_rows, 128) -> (8, 128): vreg-wise VALU adds only (no XLU).
        return x.reshape(chunk_rows // 8, 8, LANES).sum(axis=0)

    acc_ref[0] += fold(gt)
    acc_ref[1] += fold(dice_in * gt)
    acc_ref[2] += fold(dice_in)
    acc_ref[3] += fold(angle_loss_map * gt)
    acc_ref[4] += fold(iou_loss_map * gt)

    @pl.when(c == pl.num_programs(2) - 1)
    def _():
        # Tiny cross-sublane reduce once per (batch, split) -> (5, 128).
        out_ref[...] = jnp.sum(acc_ref[...], axis=1).reshape(1, 1, 5, LANES)


def _score_view(x, padded_rows):
    n = x.shape[0]
    flat = x.reshape(n, -1)                        # (N, H*W): free view (C == 1)
    pad = padded_rows * LANES - flat.shape[1]
    if pad:                                        # only if H*W isn't (8*128)-aligned
        flat = jnp.pad(flat, ((0, 0), (0, pad)))
    return flat.reshape(n, padded_rows, LANES)


def _geo_view(x, padded_rows):
    n = x.shape[0]
    flat = x.reshape(n, 5, -1)                     # (N, 5, H*W): free view, no transpose
    pad = padded_rows * LANES - flat.shape[2]
    if pad:
        flat = jnp.pad(flat, ((0, 0), (0, 0), (0, pad)))
    return flat.reshape(n, 5, padded_rows, LANES)


def east_loss(gt_score, pred_score, gt_geo, pred_geo, ignored_map,
              weight_angle=10.0, dice_eps=1e-5, max_chunk_rows=MAX_CHUNK_ROWS):
    assert max_chunk_rows % 8 == 0
    n, _, h, w = gt_score.shape
    hw = h * w

    lane_rows = pl.cdiv(hw, LANES)                 # sublane rows per image
    padded_rows = pl.cdiv(lane_rows, 8) * 8        # align to one (8,128) tile only
    chunk_rows = min(max_chunk_rows, padded_rows)  # multiple of 8, never > array rows
    num_chunks = pl.cdiv(padded_rows, chunk_rows)  # tail chunk masked in-kernel

    # Megacore: if the batch axis alone can't feed both v7x TensorCores,
    # split the row-chunk axis into a leading "parallel" axis of size 2.
    if n == 1 and num_chunks >= 2 and num_chunks % 2 == 0:
        n_split, chunks_per_split = 2, num_chunks // 2
    else:
        n_split, chunks_per_split = 1, num_chunks

    apply_row_mask = (num_chunks * chunk_rows != padded_rows)

    gt_s = _score_view(gt_score, padded_rows)
    pred_s = _score_view(pred_score, padded_rows)
    ign = _score_view(ignored_map, padded_rows)
    gg = _geo_view(gt_geo, padded_rows)
    pg = _geo_view(pred_geo, padded_rows)

    kernel = functools.partial(
        _loss_kernel, chunk_rows=chunk_rows, padded_rows=padded_rows,
        chunks_per_split=chunks_per_split, apply_row_mask=apply_row_mask)

    score_spec = pl.BlockSpec(
        (1, chunk_rows, LANES),
        lambda i, s, c: (i, s * chunks_per_split + c, 0))
    geo_spec = pl.BlockSpec(
        (1, 5, chunk_rows, LANES),
        lambda i, s, c: (i, 0, s * chunks_per_split + c, 0))

    lane_sums = pl.pallas_call(
        kernel,
        out_shape=jax.ShapeDtypeStruct((n, n_split, 5, LANES), jnp.float32),
        grid_spec=pltpu.PrefetchScalarGridSpec(
            num_scalar_prefetch=0,
            grid=(n, n_split, chunks_per_split),
            in_specs=[score_spec, score_spec, score_spec, geo_spec, geo_spec],
            out_specs=pl.BlockSpec((1, 1, 5, LANES),
                                   lambda i, s, c: (i, s, 0, 0)),
            scratch_shapes=[pltpu.VMEM((5, 8, LANES), jnp.float32)],
        ),
        compiler_params=pltpu.CompilerParams(
            dimension_semantics=("parallel", "parallel", "arbitrary"),
            vmem_limit_bytes=40 * 1024 * 1024,
        ),
    )(gt_s, pred_s, ign, gg, pg)

    sums = jnp.sum(lane_sums, axis=(0, 1, 3))      # (5,)
    sum_gt = sums[0]
    intersection = sums[1]
    sum_inputs = sums[2]
    sum_angle_w = sums[3]
    sum_iou_w = sums[4]

    # PyTorch: if torch.sum(gt_score) < 1: return torch.sum(pred_score + pred_geo) * 0
    # Kept on-device (no host sync, jit friendly), same pytree for both branches.
    # TODO(synk): original returns a bare scalar 0 in the no-positive case; here the
    # same dict is returned with both losses zeroed instead.
    no_pos = sum_gt < 1.0
    safe_gt = jnp.where(no_pos, jnp.float32(1.0), sum_gt)

    # DiceLoss(eps=1e-5) on (pred_score*(1-ignored_map), gt_score)
    denominator = sum_inputs + sum_gt
    dice_score = (2.0 * intersection + dice_eps) / (denominator + dice_eps)
    cls_loss = 1.0 - dice_score

    angle_loss = sum_angle_w / safe_gt
    iou_loss = sum_iou_w / safe_gt
    geo_loss = weight_angle * angle_loss + iou_loss

    zero = jnp.float32(0.0)
    return {"geo_loss": jnp.where(no_pos, zero, geo_loss),
            "cls_loss": jnp.where(no_pos, zero, cls_loss)}


def _reference(gt_score, pred_score, gt_geo, pred_geo, ignored_map,
               weight_angle=10.0, dice_eps=1e-5):
    gt = gt_score.astype(jnp.float32)
    inputs = pred_score.astype(jnp.float32) * (1.0 - ignored_map.astype(jnp.float32))
    inter = jnp.sum(inputs * gt)
    denom = jnp.sum(inputs) + jnp.sum(gt)
    cls_loss = 1.0 - (2.0 * inter + dice_eps) / (denom + dice_eps)
    d1_gt, d2_gt, d3_gt, d4_gt, ang_gt = jnp.split(gt_geo.astype(jnp.float32), 5, axis=1)
    d1_p, d2_p, d3_p, d4_p, ang_p = jnp.split(pred_geo.astype(jnp.float32), 5, axis=1)
    area_gt = (d1_gt + d2_gt) * (d3_gt + d4_gt)
    area_pred = (d1_p + d2_p) * (d3_p + d4_p)
    w_union = jnp.minimum(d3_gt, d3_p) + jnp.minimum(d4_gt, d4_p)
    h_union = jnp.minimum(d1_gt, d1_p) + jnp.minimum(d2_gt, d2_p)
    area_i = w_union * h_union
    area_u = area_gt + area_pred - area_i
    iou_map = -jnp.log((area_i + 1.0) / (area_u + 1.0))
    ang_map = 1.0 - jnp.cos(ang_p - ang_gt)
    sgt = jnp.sum(gt)
    return {"geo_loss": weight_angle * jnp.sum(ang_map * gt) / sgt
                        + jnp.sum(iou_map * gt) / sgt,
            "cls_loss": cls_loss}


if __name__ == "__main__":
    def make_inputs(key, n, h, w, dtype):
        k1, k2, k3, k4, k5 = jax.random.split(key, 5)
        gt_score = (jax.random.uniform(k1, (n, 1, h, w)) > 0.5).astype(dtype)
        pred_score = jax.random.uniform(k2, (n, 1, h, w)).astype(dtype)
        gt_geo = (jax.random.uniform(k3, (n, 5, h, w)) * 8.0).astype(dtype)
        pred_geo = (jax.random.uniform(k4, (n, 5, h, w)) * 8.0).astype(dtype)
        ignored_map = (jax.random.uniform(k5, (n, 1, h, w)) > 0.9).astype(dtype)
        return gt_score, pred_score, gt_geo, pred_geo, ignored_map

    loss_fn = jax.jit(east_loss, static_argnames=("max_chunk_rows",))
    key = jax.random.PRNGKey(0)

    # (n, h, w, dtype, max_chunk_rows): exercises the single-chunk, multi-chunk
    # + tail-mask, batch==1 megacore-split, and low-precision-input paths, all
    # at small shapes.
    cases = [
        (2, 16, 16, jnp.float32, MAX_CHUNK_ROWS),
        (1, 68, 68, jnp.float32, 16),
        (1, 64, 64, jnp.float32, 8),
        (2, 16, 16, jnp.bfloat16, MAX_CHUNK_ROWS),
    ]
    for idx, (n, h, w, dtype, mcr) in enumerate(cases):
        key, sub = jax.random.split(key)
        args = make_inputs(sub, n, h, w, dtype)
        out = jax.block_until_ready(loss_fn(*args, max_chunk_rows=mcr))
        ref = _reference(*args)
        assert jnp.allclose(out["geo_loss"], ref["geo_loss"], rtol=2e-3, atol=2e-4), \
            (idx, out["geo_loss"], ref["geo_loss"])
        assert jnp.allclose(out["cls_loss"], ref["cls_loss"], rtol=2e-3, atol=2e-4), \
            (idx, out["cls_loss"], ref["cls_loss"])

    print("KERNEL_OK")
</pallas_src>

<mosaic_0001>
module attributes {stable_mosaic.version = 11 : i64} {
  func.func @_loss_kernel(%arg0: i32, %arg1: i32, %arg2: i32, %arg3: memref<1x8x128xf32, #tpu.memory_space<vmem>>, %arg4: memref<1x8x128xf32, #tpu.memory_space<vmem>>, %arg5: memref<1x8x128xf32, #tpu.memory_space<vmem>>, %arg6: memref<1x5x8x128xf32, #tpu.memory_space<vmem>>, %arg7: memref<1x5x8x128xf32, #tpu.memory_space<vmem>>, %arg8: memref<1x1x5x128xf32, #tpu.memory_space<vmem>>, %arg9: memref<5x8x128xf32, #tpu.memory_space<vmem>>) attributes {dimension_semantics = [#tpu.dimension_semantics<parallel>, #tpu.dimension_semantics<parallel>, #tpu.dimension_semantics<arbitrary>], iteration_bounds = array<i64: 2, 1, 1>, scalar_prefetch = 0 : i64, scratch_operands = 1 : i64, tpu.core_type = #tpu.core_type<tc>, window_params = [{transform_indices = @transform_0, window_bounds = array<i64: 1, 8, 128>}, {transform_indices = @transform_1, window_bounds = array<i64: 1, 8, 128>}, {transform_indices = @transform_2, window_bounds = array<i64: 1, 8, 128>}, {transform_indices = @transform_3, window_bounds = array<i64: 1, 5, 8, 128>}, {transform_indices = @transform_4, window_bounds = array<i64: 1, 5, 8, 128>}, {transform_indices = @transform_5, window_bounds = array<i64: 1, 1, 5, 128>}]} {
    %c0_i32 = arith.constant 0 : i32
    %0 = arith.cmpi eq, %arg2, %c0_i32 : i32
    %1 = arith.extui %0 : i1 to i32
    %c0_i32_0 = arith.constant 0 : i32
    %2 = arith.cmpi ne, %1, %c0_i32_0 : i32
    scf.if %2 {
      %cst_86 = arith.constant 0.000000e+00 : f32
      %105 = vector.broadcast %cst_86 : f32 to vector<5x8x128xf32>
      %c0_87 = arith.constant 0 : index
      %c0_88 = arith.constant 0 : index
      %c0_89 = arith.constant 0 : index
      %106 = vector.load %arg9[%c0_87, %c0_88, %c0_89] : memref<5x8x128xf32, #tpu.memory_space<vmem>>, vector<5x8x128xf32>
      tpu.vector_store %arg9[%c0_87, %c0_88, %c0_89], %105 {strides = array<i32>} : memref<5x8x128xf32, #tpu.memory_space<vmem>>, vector<5x8x128xf32>,
    } else {
    }
    %c0 = arith.constant 0 : index
    %c0_1 = arith.constant 0 : index
    %c0_2 = arith.constant 0 : index
    %3 = vector.load %arg3[%c0, %c0_1, %c0_2] : memref<1x8x128xf32, #tpu.memory_space<vmem>>, vector<1x8x128xf32>
    %4 = vector.shape_cast %3 : vector<1x8x128xf32> to vector<8x128xf32>
    %c0_3 = arith.constant 0 : index
    %c0_4 = arith.constant 0 : index
    %c0_5 = arith.constant 0 : index
    %5 = vector.load %arg4[%c0_3, %c0_4, %c0_5] : memref<1x8x128xf32, #tpu.memory_space<vmem>>, vector<1x8x128xf32>
    %6 = vector.shape_cast %5 : vector<1x8x128xf32> to vector<8x128xf32>
    %c0_6 = arith.constant 0 : index
    %c0_7 = arith.constant 0 : index
    %c0_8 = arith.constant 0 : index
    %7 = vector.load %arg5[%c0_6, %c0_7, %c0_8] : memref<1x8x128xf32, #tpu.memory_space<vmem>>, vector<1x8x128xf32>
    %8 = vector.shape_cast %7 : vector<1x8x128xf32> to vector<8x128xf32>
    %cst = arith.constant 1.000000e+00 : f32
    %9 = vector.broadcast %cst : f32 to vector<8x128xf32>
    %10 = arith.subf %9, %8 : vector<8x128xf32>
    %11 = arith.mulf %6, %10 : vector<8x128xf32>
    %c0_9 = arith.constant 0 : index
    %c0_10 = arith.constant 0 : index
    %c0_11 = arith.constant 0 : index
    %c0_12 = arith.constant 0 : index
    %12 = vector.load %arg6[%c0_9, %c0_10, %c0_11, %c0_12] : memref<1x5x8x128xf32, #tpu.memory_space<vmem>>, vector<1x1x8x128xf32>
    %13 = vector.shape_cast %12 : vector<1x1x8x128xf32> to vector<8x128xf32>
    %c0_13 = arith.constant 0 : index
    %c1 = arith.constant 1 : index
    %c0_14 = arith.constant 0 : index
    %c0_15 = arith.constant 0 : index
    %14 = vector.load %arg6[%c0_13, %c1, %c0_14, %c0_15] : memref<1x5x8x128xf32, #tpu.memory_space<vmem>>, vector<1x1x8x128xf32>
    %15 = vector.shape_cast %14 : vector<1x1x8x128xf32> to vector<8x128xf32>
    %c0_16 = arith.constant 0 : index
    %c2 = arith.constant 2 : index
    %c0_17 = arith.constant 0 : index
    %c0_18 = arith.constant 0 : index
    %16 = vector.load %arg6[%c0_16, %c2, %c0_17, %c0_18] : memref<1x5x8x128xf32, #tpu.memory_space<vmem>>, vector<1x1x8x128xf32>
    %17 = vector.shape_cast %16 : vector<1x1x8x128xf32> to vector<8x128xf32>
    %c0_19 = arith.constant 0 : index
    %c3 = arith.constant 3 : index
    %c0_20 = arith.constant 0 : index
    %c0_21 = arith.constant 0 : index
    %18 = vector.load %arg6[%c0_19, %c3, %c0_20, %c0_21] : memref<1x5x8x128xf32, #tpu.memory_space<vmem>>, vector<1x1x8x128xf32>
    %19 = vector.shape_cast %18 : vector<1x1x8x128xf32> to vector<8x128xf32>
    %c0_22 = arith.constant 0 : index
    %c4 = arith.constant 4 : index
    %c0_23 = arith.constant 0 : index
    %c0_24 = arith.constant 0 : index
    %20 = vector.load %arg6[%c0_22, %c4, %c0_23, %c0_24] : memref<1x5x8x128xf32, #tpu.memory_space<vmem>>, vector<1x1x8x128xf32>
    %21 = vector.shape_cast %20 : vector<1x1x8x128xf32> to vector<8x128xf32>
    %c0_25 = arith.constant 0 : index
    %c0_26 = arith.constant 0 : index
    %c0_27 = arith.constant 0 : index
    %c0_28 = arith.constant 0 : index
    %22 = vector.load %arg7[%c0_25, %c0_26, %c0_27, %c0_28] : memref<1x5x8x128xf32, #tpu.memory_space<vmem>>, vector<1x1x8x128xf32>
    %23 = vector.shape_cast %22 : vector<1x1x8x128xf32> to vector<8x128xf32>
    %c0_29 = arith.constant 0 : index
    %c1_30 = arith.constant 1 : index
    %c0_31 = arith.constant 0 : index
    %c0_32 = arith.constant 0 : index
    %24 = vector.load %arg7[%c0_29, %c1_30, %c0_31, %c0_32] : memref<1x5x8x128xf32, #tpu.memory_space<vmem>>, vector<1x1x8x128xf32>
    %25 = vector.shape_cast %24 : vector<1x1x8x128xf32> to vector<8x128xf32>
    %c0_33 = arith.constant 0 : index
    %c2_34 = arith.constant 2 : index
    %c0_35 = arith.constant 0 : index
    %c0_36 = arith.constant 0 : index
    %26 = vector.load %arg7[%c0_33, %c2_34, %c0_35, %c0_36] : memref<1x5x8x128xf32, #tpu.memory_space<vmem>>, vector<1x1x8x128xf32>
    %27 = vector.shape_cast %26 : vector<1x1x8x128xf32> to vector<8x128xf32>
    %c0_37 = arith.constant 0 : index
    %c3_38 = arith.constant 3 : index
    %c0_39 = arith.constant 0 : index
    %c0_40 = arith.constant 0 : index
    %28 = vector.load %arg7[%c0_37, %c3_38, %c0_39, %c0_40] : memref<1x5x8x128xf32, #tpu.memory_space<vmem>>, vector<1x1x8x128xf32>
    %29 = vector.shape_cast %28 : vector<1x1x8x128xf32> to vector<8x128xf32>
    %c0_41 = arith.constant 0 : index
    %c4_42 = arith.constant 4 : index
    %c0_43 = arith.constant 0 : index
    %c0_44 = arith.constant 0 : index
    %30 = vector.load %arg7[%c0_41, %c4_42, %c0_43, %c0_44] : memref<1x5x8x128xf32, #tpu.memory_space<vmem>>, vector<1x1x8x128xf32>
    %31 = vector.shape_cast %30 : vector<1x1x8x128xf32> to vector<8x128xf32>
    %32 = arith.addf %13, %15 : vector<8x128xf32>
    %33 = arith.addf %17, %19 : vector<8x128xf32>
    %34 = arith.mulf %32, %33 : vector<8x128xf32>
    %35 = arith.addf %23, %25 : vector<8x128xf32>
    %36 = arith.addf %27, %29 : vector<8x128xf32>
    %37 = arith.mulf %35, %36 : vector<8x128xf32>
    %38 = arith.minimumf %17, %27 : vector<8x128xf32>
    %39 = arith.minimumf %19, %29 : vector<8x128xf32>
    %40 = arith.addf %38, %39 : vector<8x128xf32>
    %41 = arith.minimumf %13, %23 : vector<8x128xf32>
    %42 = arith.minimumf %15, %25 : vector<8x128xf32>
    %43 = arith.addf %41, %42 : vector<8x128xf32>
    %44 = arith.mulf %40, %43 : vector<8x128xf32>
    %45 = arith.addf %34, %37 : vector<8x128xf32>
    %46 = arith.subf %45, %44 : vector<8x128xf32>
    %cst_45 = arith.constant 1.000000e+00 : f32
    %47 = vector.broadcast %cst_45 : f32 to vector<8x128xf32>
    %48 = arith.addf %44, %47 : vector<8x128xf32>
    %cst_46 = arith.constant 1.000000e+00 : f32
    %49 = vector.broadcast %cst_46 : f32 to vector<8x128xf32>
    %50 = arith.addf %46, %49 : vector<8x128xf32>
    %51 = arith.divf %48, %50 : vector<8x128xf32>
    %52 = math.log %51 : vector<8x128xf32>
    %cst_47 = arith.constant 0.000000e+00 : f32
    %53 = vector.broadcast %cst_47 : f32 to vector<8x128xf32>
    %54 = arith.subf %53, %52 : vector<8x128xf32>
    %55 = arith.subf %31, %21 : vector<8x128xf32>
    %56 = math.cos %55 : vector<8x128xf32>
    %cst_48 = arith.constant 1.000000e+00 : f32
    %57 = vector.broadcast %cst_48 : f32 to vector<8x128xf32>
    %58 = arith.subf %57, %56 : vector<8x128xf32>
    %c0_49 = arith.constant 0 : index
    %c0_50 = arith.constant 0 : index
    %c0_51 = arith.constant 0 : index
    %59 = vector.load %arg9[%c0_49, %c0_50, %c0_51] : memref<5x8x128xf32, #tpu.memory_space<vmem>>, vector<1x8x128xf32>
    %60 = vector.shape_cast %59 : vector<1x8x128xf32> to vector<8x128xf32>
    %61 = vector.shape_cast %4 : vector<8x128xf32> to vector<1x8x128xf32>
    %cst_52 = arith.constant dense<0.000000e+00> : vector<8x128xf32>
    %62 = vector.multi_reduction <add>, %61, %cst_52 [0] : vector<1x8x128xf32> to vector<8x128xf32>
    %63 = arith.addf %60, %62 : vector<8x128xf32>
    %c0_53 = arith.constant 0 : index
    %c0_54 = arith.constant 0 : index
    %c0_55 = arith.constant 0 : index
    %64 = vector.load %arg9[%c0_53, %c0_54, %c0_55] : memref<5x8x128xf32, #tpu.memory_space<vmem>>, vector<1x8x128xf32>
    %65 = vector.shape_cast %64 : vector<1x8x128xf32> to vector<8x128xf32>
    %66 = vector.shape_cast %63 : vector<8x128xf32> to vector<1x8x128xf32>
    tpu.vector_store %arg9[%c0_53, %c0_54, %c0_55], %66 {strides = array<i32>} : memref<5x8x128xf32, #tpu.memory_space<vmem>>, vector<1x8x128xf32>,
    %c1_56 = arith.constant 1 : index
    %c0_57 = arith.constant 0 : index
    %c0_58 = arith.constant 0 : index
    %67 = vector.load %arg9[%c1_56, %c0_57, %c0_58] : memref<5x8x128xf32, #tpu.memory_space<vmem>>, vector<1x8x128xf32>
    %68 = vector.shape_cast %67 : vector<1x8x128xf32> to vector<8x128xf32>
    %69 = arith.mulf %11, %4 : vector<8x128xf32>
    %70 = vector.shape_cast %69 : vector<8x128xf32> to vector<1x8x128xf32>
    %cst_59 = arith.constant dense<0.000000e+00> : vector<8x128xf32>
    %71 = vector.multi_reduction <add>, %70, %cst_59 [0] : vector<1x8x128xf32> to vector<8x128xf32>
    %72 = arith.addf %68, %71 : vector<8x128xf32>
    %c1_60 = arith.constant 1 : index
    %c0_61 = arith.constant 0 : index
    %c0_62 = arith.constant 0 : index
    %73 = vector.load %arg9[%c1_60, %c0_61, %c0_62] : memref<5x8x128xf32, #tpu.memory_space<vmem>>, vector<1x8x128xf32>
    %74 = vector.shape_cast %73 : vector<1x8x128xf32> to vector<8x128xf32>
    %75 = vector.shape_cast %72 : vector<8x128xf32> to vector<1x8x128xf32>
    tpu.vector_store %arg9[%c1_60, %c0_61, %c0_62], %75 {strides = array<i32>} : memref<5x8x128xf32, #tpu.memory_space<vmem>>, vector<1x8x128xf32>,
    %c2_63 = arith.constant 2 : index
    %c0_64 = arith.constant 0 : index
    %c0_65 = arith.constant 0 : index
    %76 = vector.load %arg9[%c2_63, %c0_64, %c0_65] : memref<5x8x128xf32, #tpu.memory_space<vmem>>, vector<1x8x128xf32>
    %77 = vector.shape_cast %76 : vector<1x8x128xf32> to vector<8x128xf32>
    %78 = vector.shape_cast %11 : vector<8x128xf32> to vector<1x8x128xf32>
    %cst_66 = arith.constant dense<0.000000e+00> : vector<8x128xf32>
    %79 = vector.multi_reduction <add>, %78, %cst_66 [0] : vector<1x8x128xf32> to vector<8x128xf32>
    %80 = arith.addf %77, %79 : vector<8x128xf32>
    %c2_67 = arith.constant 2 : index
    %c0_68 = arith.constant 0 : index
    %c0_69 = arith.constant 0 : index
    %81 = vector.load %arg9[%c2_67, %c0_68, %c0_69] : memref<5x8x128xf32, #tpu.memory_space<vmem>>, vector<1x8x128xf32>
    %82 = vector.shape_cast %81 : vector<1x8x128xf32> to vector<8x128xf32>
    %83 = vector.shape_cast %80 : vector<8x128xf32> to vector<1x8x128xf32>
    tpu.vector_store %arg9[%c2_67, %c0_68, %c0_69], %83 {strides = array<i32>} : memref<5x8x128xf32, #tpu.memory_space<vmem>>, vector<1x8x128xf32>,
    %c3_70 = arith.constant 3 : index
    %c0_71 = arith.constant 0 : index
    %c0_72 = arith.constant 0 : index
    %84 = vector.load %arg9[%c3_70, %c0_71, %c0_72] : memref<5x8x128xf32, #tpu.memory_space<vmem>>, vector<1x8x128xf32>
    %85 = vector.shape_cast %84 : vector<1x8x128xf32> to vector<8x128xf32>
    %86 = arith.mulf %58, %4 : vector<8x128xf32>
    %87 = vector.shape_cast %86 : vector<8x128xf32> to vector<1x8x128xf32>
    %cst_73 = arith.constant dense<0.000000e+00> : vector<8x128xf32>
    %88 = vector.multi_reduction <add>, %87, %cst_73 [0] : vector<1x8x128xf32> to vector<8x128xf32>
    %89 = arith.addf %85, %88 : vector<8x128xf32>
    %c3_74 = arith.constant 3 : index
    %c0_75 = arith.constant 0 : index
    %c0_76 = arith.constant 0 : index
    %90 = vector.load %arg9[%c3_74, %c0_75, %c0_76] : memref<5x8x128xf32, #tpu.memory_space<vmem>>, vector<1x8x128xf32>
    %91 = vector.shape_cast %90 : vector<1x8x128xf32> to vector<8x128xf32>
    %92 = vector.shape_cast %89 : vector<8x128xf32> to vector<1x8x128xf32>
    tpu.vector_store %arg9[%c3_74, %c0_75, %c0_76], %92 {strides = array<i32>} : memref<5x8x128xf32, #tpu.memory_space<vmem>>, vector<1x8x128xf32>,
    %c4_77 = arith.constant 4 : index
    %c0_78 = arith.constant 0 : index
    %c0_79 = arith.constant 0 : index
    %93 = vector.load %arg9[%c4_77, %c0_78, %c0_79] : memref<5x8x128xf32, #tpu.memory_space<vmem>>, vector<1x8x128xf32>
    %94 = vector.shape_cast %93 : vector<1x8x128xf32> to vector<8x128xf32>
    %95 = arith.mulf %54, %4 : vector<8x128xf32>
    %96 = vector.shape_cast %95 : vector<8x128xf32> to vector<1x8x128xf32>
    %cst_80 = arith.constant dense<0.000000e+00> : vector<8x128xf32>
    %97 = vector.multi_reduction <add>, %96, %cst_80 [0] : vector<1x8x128xf32> to vector<8x128xf32>
    %98 = arith.addf %94, %97 : vector<8x128xf32>
    %c4_81 = arith.constant 4 : index
    %c0_82 = arith.constant 0 : index
    %c0_83 = arith.constant 0 : index
    %99 = vector.load %arg9[%c4_81, %c0_82, %c0_83] : memref<5x8x128xf32, #tpu.memory_space<vmem>>, vector<1x8x128xf32>
    %100 = vector.shape_cast %99 : vector<1x8x128xf32> to vector<8x128xf32>
    %101 = vector.shape_cast %98 : vector<8x128xf32> to vector<1x8x128xf32>
    tpu.vector_store %arg9[%c4_81, %c0_82, %c0_83], %101 {strides = array<i32>} : memref<5x8x128xf32, #tpu.memory_space<vmem>>, vector<1x8x128xf32>,
    %c0_i32_84 = arith.constant 0 : i32
    %102 = arith.cmpi eq, %arg2, %c0_i32_84 : i32
    %103 = arith.extui %102 : i1 to i32
    %c0_i32_85 = arith.constant 0 : i32
    %104 = arith.cmpi ne, %103, %c0_i32_85 : i32
    scf.if %104 {
      %c0_86 = arith.constant 0 : index
      %c0_87 = arith.constant 0 : index
      %c0_88 = arith.constant 0 : index
      %105 = vector.load %arg9[%c0_86, %c0_87, %c0_88] : memref<5x8x128xf32, #tpu.memory_space<vmem>>, vector<5x8x128xf32>
      %cst_89 = arith.constant dense<0.000000e+00> : vector<5x128xf32>
      %106 = vector.multi_reduction <add>, %105, %cst_89 [1] : vector<5x8x128xf32> to vector<5x128xf32>
      %107 = vector.shape_cast %106 : vector<5x128xf32> to vector<1x1x5x128xf32>
      %c0_90 = arith.constant 0 : index
      %c0_91 = arith.constant 0 : index
      %c0_92 = arith.constant 0 : index
      %c0_93 = arith.constant 0 : index
      %108 = vector.load %arg8[%c0_90, %c0_91, %c0_92, %c0_93] : memref<1x1x5x128xf32, #tpu.memory_space<vmem>>, vector<1x1x5x128xf32>
      tpu.vector_store %arg8[%c0_90, %c0_91, %c0_92, %c0_93], %107 {strides = array<i32>} : memref<1x1x5x128xf32, #tpu.memory_space<vmem>>, vector<1x1x5x128xf32>,
    } else {
    }
    return
  }
  func.func @transform_0(%arg0: i32, %arg1: i32, %arg2: i32) -> (i32, i32, i32) {
    %c1_i32 = arith.constant 1 : i32
    %0 = arith.muli %arg1, %c1_i32 : i32
    %1 = arith.addi %0, %arg2 : i32
    %c0_i32 = arith.constant 0 : i32
    %c0_i32_0 = arith.constant 0 : i32
    return %arg0, %1, %c0_i32 : i32, i32, i32
  }
  func.func @transform_1(%arg0: i32, %arg1: i32, %arg2: i32) -> (i32, i32, i32) {
    %c1_i32 = arith.constant 1 : i32
    %0 = arith.muli %arg1, %c1_i32 : i32
    %1 = arith.addi %0, %arg2 : i32
    %c0_i32 = arith.constant 0 : i32
    %c0_i32_0 = arith.constant 0 : i32
    return %arg0, %1, %c0_i32 : i32, i32, i32
  }
  func.func @transform_2(%arg0: i32, %arg1: i32, %arg2: i32) -> (i32, i32, i32) {
    %c1_i32 = arith.constant 1 : i32
    %0 = arith.muli %arg1, %c1_i32 : i32
    %1 = arith.addi %0, %arg2 : i32
    %c0_i32 = arith.constant 0 : i32
    %c0_i32_0 = arith.constant 0 : i32
    return %arg0, %1, %c0_i32 : i32, i32, i32
  }
  func.func @transform_3(%arg0: i32, %arg1: i32, %arg2: i32) -> (i32, i32, i32, i32) {
    %c1_i32 = arith.constant 1 : i32
    %0 = arith.muli %arg1, %c1_i32 : i32
    %1 = arith.addi %0, %arg2 : i32
    %c0_i32 = arith.constant 0 : i32
    %c0_i32_0 = arith.constant 0 : i32
    %c0_i32_1 = arith.constant 0 : i32
    return %arg0, %c0_i32, %1, %c0_i32_0 : i32, i32, i32, i32
  }
  func.func @transform_4(%arg0: i32, %arg1: i32, %arg2: i32) -> (i32, i32, i32, i32) {
    %c1_i32 = arith.constant 1 : i32
    %0 = arith.muli %arg1, %c1_i32 : i32
    %1 = arith.addi %0, %arg2 : i32
    %c0_i32 = arith.constant 0 : i32
    %c0_i32_0 = arith.constant 0 : i32
    %c0_i32_1 = arith.constant 0 : i32
    return %arg0, %c0_i32, %1, %c0_i32_0 : i32, i32, i32, i32
  }
  func.func @transform_5(%arg0: i32, %arg1: i32, %arg2: i32) -> (i32, i32, i32, i32) {
    %c0_i32 = arith.constant 0 : i32
    %c0_i32_0 = arith.constant 0 : i32
    %c0_i32_1 = arith.constant 0 : i32
    return %arg0, %arg1, %c0_i32, %c0_i32_0 : i32, i32, i32, i32
  }
}

</mosaic_0001>

<llo_original>
// kernel: east_loss.1
$region0: #{east_loss.1}
  #allocation0 [shape = 'u32[]', space=smem, size = 0x4, offset = 0x4, fixed_abs, tag = 'smem constant byte address 0x4 - core index']
  #allocation1 [shape = 'u32[72,128]{1,0:T(1,128)}', space=vmem, size = 0x9000, scoped, tag = 'internal scratch']
  #allocation2 [shape = 'f32[5,8,128]{2,1,0:T(8,128)}', space=vmem, size = 0x5000, scoped, tag = 'scratch operand']
  %s0 = inlined_call_operand.vmem [shape: f32[2,8,128], index: 0, kind: input, shape index: {}]
  %s1 = inlined_call_operand.vmem [shape: f32[2,8,128], index: 1, kind: input, shape index: {}]
  %s2 = inlined_call_operand.vmem [shape: f32[2,8,128], index: 2, kind: input, shape index: {}]
  %s3 = inlined_call_operand.vmem [shape: f32[2,5,8,128], index: 3, kind: input, shape index: {}]
  %s4 = inlined_call_operand.vmem [shape: f32[2,5,8,128], index: 4, kind: input, shape index: {}]
  %s5 = inlined_call_operand.vmem [shape: f32[2,1,5,128], index: 5, kind: output, shape index: {}]
  %s6 = sld [smem:[#allocation0]]
  $region61: #{east_loss.1} parent=0
    _
  %s8 = ssub.s32 1, %s6
  %s9 = scalar_select 0, %s8, %s6
  loop: start=0, step=1, limit=4
  $region2: #{east_loss.1} parent=0 // loop_pre_header
    _
  $region3: #{east_loss.1} parent=0 // loop_header
    %s11 = sphi 0, %s15
    %p12 = scmp.ge.s32.totalorder %s11, 4
    %s18 = sphi 0, %s37
    %s19 = sphi 0, %s33
    %s20 = sphi 0, %s29
    %s21 = sphi 0, %s18
    %s22 = sphi 0, %s19
    %s23 = sphi 0, %s20
    %s24 = sphi 0, %s21
    %s25 = sphi 0, %s22
    %s26 = sphi 0, %s23
    %s44 = sphi 0, %s46
    %s47 = sphi 0, %s44
    %s48 = sphi 0, %s47
    %s64 = sphi 0, %s48
    %s74 = sphi 0, %s76
    %s77 = sphi 0, %s74
    %s78 = sphi 0, %s77
    %s94 = sphi 0, %s78
    %s104 = sphi 0, %s106
    %s107 = sphi 0, %s104
    %s108 = sphi 0, %s107
    %s124 = sphi 0, %s108
    %s134 = sphi 0, %s136
    %s137 = sphi 0, %s134
    %s138 = sphi 0, %s137
    %s154 = sphi 0, %s138
    %s164 = sphi 0, %s166
    %s167 = sphi 0, %s164
    %s168 = sphi 0, %s167
    %s184 = sphi 0, %s168
    %s192 = sphi 0, %s194
    %s195 = sphi 0, %s192
    %s196 = sphi 0, %s195
    %s212 = sphi 0, %s196
  $region4: #{east_loss.1} parent=0 // loop_header_branch
    %14 = sbr.rel (%p12) target = $region8
  $region5: #{east_loss.1} parent=0 // loop_body
    %s16 = ssub.s32 %s11, 1
    %s17 = ssub.s32 %s11, 2
    %s27 = sadd.s32 1, %s20
    %p28 = scmp.ge.s32.totalorder %s27, 1
    %s29 = scalar_select %p28, 0, %s27
    %s30 = sadd.s32 1, %s19
    %s31 = scalar_select %p28, %s30, %s19
    %p32 = scmp.ge.s32.totalorder %s31, 1
    %s33 = scalar_select %p32, 0, %s31
    %s34 = sadd.s32 1, %s18
    %s35 = scalar_select %p32, %s34, %s18
    %p36 = scmp.ge.s32.totalorder %s35, 2
    %s37 = scalar_select %p36, 0, %s35
    %s38 = sadd.s32 %s19, %s20
    %s39 = sadd.s32 %s33, %s29
    %s40 = ssub.s32 %s18, %s37
    %s41 = ssub.s32 %s38, %s39
    %s42 = sor.u32 %s40, %s41
    %p43 = scmp.eq.s32.totalorder %s42, 0
    %s45 = sadd.s32 %s44, 1
    %s46 = scalar_select %p43, %s44, %s45
    %p49 = pneg %p43
    %p50 = scmp.eq.s32.totalorder %s11, 1
    %p51 = por %p49, %p50
    %p52 = scmp.ne.s32.totalorder %s44, %s47
    %p53 = scmp.eq.s32.totalorder %s11, 0
    %p54 = por %p52, %p53
    %p55 = scmp.ne.s32.totalorder %s44, %s47
    %p56 = scmp.eq.s32.totalorder %s16, 1
    %p57 = por %p55, %p56
    %p58 = scmp.ne.s32.totalorder %s47, %s48
    %p59 = scmp.eq.s32.totalorder %s16, 0
    %p60 = por %p58, %p59
    %p61 = scmp.ne.s32.totalorder %s47, %s48
    %p62 = scmp.eq.s32.totalorder %s17, 1
    %p63 = por %p61, %p62
    %p65 = scmp.ne.s32.totalorder %s48, %s64
    %p66 = scmp.eq.s32.totalorder %s17, 0
    %p67 = por %p65, %p66
    %s68 = sadd.s32 %s19, %s20
    %s69 = sadd.s32 %s33, %s29
    %s70 = ssub.s32 %s18, %s37
    %s71 = ssub.s32 %s68, %s69
    %s72 = sor.u32 %s70, %s71
    %p73 = scmp.eq.s32.totalorder %s72, 0
    %s75 = sadd.s32 %s74, 1
    %s76 = scalar_select %p73, %s74, %s75
    %p79 = pneg %p73
    %p80 = scmp.eq.s32.totalorder %s11, 1
    %p81 = por %p79, %p80
    %p82 = scmp.ne.s32.totalorder %s74, %s77
    %p83 = scmp.eq.s32.totalorder %s11, 0
    %p84 = por %p82, %p83
    %p85 = scmp.ne.s32.totalorder %s74, %s77
    %p86 = scmp.eq.s32.totalorder %s16, 1
    %p87 = por %p85, %p86
    %p88 = scmp.ne.s32.totalorder %s77, %s78
    %p89 = scmp.eq.s32.totalorder %s16, 0
    %p90 = por %p88, %p89
    %p91 = scmp.ne.s32.totalorder %s77, %s78
    %p92 = scmp.eq.s32.totalorder %s17, 1
    %p93 = por %p91, %p92
    %p95 = scmp.ne.s32.totalorder %s78, %s94
    %p96 = scmp.eq.s32.totalorder %s17, 0
    %p97 = por %p95, %p96
    %s98 = sadd.s32 %s19, %s20
    %s99 = sadd.s32 %s33, %s29
    %s100 = ssub.s32 %s18, %s37
    %s101 = ssub.s32 %s98, %s99
    %s102 = sor.u32 %s100, %s101
    %p103 = scmp.eq.s32.totalorder %s102, 0
    %s105 = sadd.s32 %s104, 1
    %s106 = scalar_select %p103, %s104, %s105
    %p109 = pneg %p103
    %p110 = scmp.eq.s32.totalorder %s11, 1
    %p111 = por %p109, %p110
    %p112 = scmp.ne.s32.totalorder %s104, %s107
    %p113 = scmp.eq.s32.totalorder %s11, 0
    %p114 = por %p112, %p113
    %p115 = scmp.ne.s32.totalorder %s104, %s107
    %p116 = scmp.eq.s32.totalorder %s16, 1
    %p117 = por %p115, %p116
    %p118 = scmp.ne.s32.totalorder %s107, %s108
    %p119 = scmp.eq.s32.totalorder %s16, 0
    %p120 = por %p118, %p119
    %p121 = scmp.ne.s32.totalorder %s107, %s108
    %p122 = scmp.eq.s32.totalorder %s17, 1
    %p123 = por %p121, %p122
    %p125 = scmp.ne.s32.totalorder %s108, %s124
    %p126 = scmp.eq.s32.totalorder %s17, 0
    %p127 = por %p125, %p126
    %s128 = sadd.s32 %s19, %s20
    %s129 = sadd.s32 %s33, %s29
    %s130 = ssub.s32 %s18, %s37
    %s131 = ssub.s32 %s128, %s129
    %s132 = sor.u32 %s130, %s131
    %p133 = scmp.eq.s32.totalorder %s132, 0
    %s135 = sadd.s32 %s134, 1
    %s136 = scalar_select %p133, %s134, %s135
    %p139 = pneg %p133
    %p140 = scmp.eq.s32.totalorder %s11, 1
    %p141 = por %p139, %p140
    %p142 = scmp.ne.s32.totalorder %s134, %s137
    %p143 = scmp.eq.s32.totalorder %s11, 0
    %p144 = por %p142, %p143
    %p145 = scmp.ne.s32.totalorder %s134, %s137
    %p146 = scmp.eq.s32.totalorder %s16, 1
    %p147 = por %p145, %p146
    %p148 = scmp.ne.s32.totalorder %s137, %s138
    %p149 = scmp.eq.s32.totalorder %s16, 0
    %p150 = por %p148, %p149
    %p151 = scmp.ne.s32.totalorder %s137, %s138
    %p152 = scmp.eq.s32.totalorder %s17, 1
    %p153 = por %p151, %p152
    %p155 = scmp.ne.s32.totalorder %s138, %s154
    %p156 = scmp.eq.s32.totalorder %s17, 0
    %p157 = por %p155, %p156
    %s158 = sadd.s32 %s19, %s20
    %s159 = sadd.s32 %s33, %s29
    %s160 = ssub.s32 %s18, %s37
    %s161 = ssub.s32 %s158, %s159
    %s162 = sor.u32 %s160, %s161
    %p163 = scmp.eq.s32.totalorder %s162, 0
    %s165 = sadd.s32 %s164, 1
    %s166 = scalar_select %p163, %s164, %s165
    %p169 = pneg %p163
    %p170 = scmp.eq.s32.totalorder %s11, 1
    %p171 = por %p169, %p170
    %p172 = scmp.ne.s32.totalorder %s164, %s167
    %p173 = scmp.eq.s32.totalorder %s11, 0
    %p174 = por %p172, %p173
    %p175 = scmp.ne.s32.totalorder %s164, %s167
    %p176 = scmp.eq.s32.totalorder %s16, 1
    %p177 = por %p175, %p176
    %p178 = scmp.ne.s32.totalorder %s167, %s168
    %p179 = scmp.eq.s32.totalorder %s16, 0
    %p180 = por %p178, %p179
    %p181 = scmp.ne.s32.totalorder %s167, %s168
    %p182 = scmp.eq.s32.totalorder %s17, 1
    %p183 = por %p181, %p182
    %p185 = scmp.ne.s32.totalorder %s168, %s184
    %p186 = scmp.eq.s32.totalorder %s17, 0
    %p187 = por %p185, %p186
    %s188 = ssub.s32 %s18, %s37
    %s189 = ssub.s32 %s19, %s33
    %s190 = sor.u32 %s188, %s189
    %p191 = scmp.eq.s32.totalorder %s190, 0
    %s193 = sadd.s32 %s192, 1
    %s194 = scalar_select %p191, %s192, %s193
    %p197 = pneg %p191
    %p198 = scmp.eq.s32.totalorder %s11, 1
    %p199 = por %p197, %p198
    %p200 = scmp.ne.s32.totalorder %s192, %s195
    %p201 = scmp.eq.s32.totalorder %s11, 0
    %p202 = por %p200, %p201
    %p203 = scmp.ne.s32.totalorder %s192, %s195
    %p204 = scmp.eq.s32.totalorder %s16, 1
    %p205 = por %p203, %p204
    %p206 = scmp.ne.s32.totalorder %s195, %s196
    %p207 = scmp.eq.s32.totalorder %s16, 0
    %p208 = por %p206, %p207
    %p209 = scmp.ne.s32.totalorder %s195, %s196
    %p210 = scmp.eq.s32.totalorder %s17, 1
    %p211 = por %p209, %p210
    %p213 = scmp.ne.s32.totalorder %s196, %s212
    %p214 = scmp.eq.s32.totalorder %s17, 0
    %p215 = por %p213, %p214
    %p216 = scmp.le.s32.totalorder 1, %s11
    %p217 = scmp.lt.s32.totalorder %s11, 3
    %p218 = pnand %p216, %p217
    %p219 = pneg %p218
    // Predicated region
    $region9: #{east_loss.1} parent=5 // pred_check
      _
    $region10: #{east_loss.1} parent=5 // pred_check_branch
      %221 = sbr.rel (%p218) target = $region12
    $region11: #{east_loss.1} parent=5 // pred_region
      %s222 = ssub.s32 %s11, 1
    $region12: #{east_loss.1} parent=5 // pred_fallthru
      _
    %p223 = scmp.lt.s32.totalorder %s11, 2
    // Predicated region
    $region13: #{east_loss.1} parent=5 // pred_check
      %p224 = pneg %p223
    $region14: #{east_loss.1} parent=5 // pred_check_branch
      %226 = sbr.rel (%p224) target = $region16
    $region15: #{east_loss.1} parent=5 // pred_region
      // Predicated region
      $region17: #{east_loss.1} parent=15 // pred_check
        %p227 = pneg %p54
      $region18: #{east_loss.1} parent=15 // pred_check_branch
        %229 = sbr.rel (%p227) target = $region20
      $region19: #{east_loss.1} parent=15 // pred_region
        %s230 = sadd.s32 %s19, %s20
        %p231 = scmp.lt.s32.totalorder %s18, 1
        %s232 = scalar_select %p231, %s18, 1
        %p233 = scmp.lt.s32.totalorder %s230, 0
        %s234 = scalar_select %p233, %s230, 0
        %s235 = sadd.s32 %s234, %s232
        %s236 = smul.addr %s235, 8
        %s237 = scalar_lea.vmem %s0, %s236
        %s238 = sadd.s32 %s19, %s20
      $region20: #{east_loss.1} parent=15 // pred_fallthru
        _
      // Predicated region
      $region21: #{east_loss.1} parent=15 // pred_check
        %p239 = pneg %p84
      $region22: #{east_loss.1} parent=15 // pred_check_branch
        %241 = sbr.rel (%p239) target = $region24
      $region23: #{east_loss.1} parent=15 // pred_region
        %s242 = sadd.s32 %s19, %s20
        %p243 = scmp.lt.s32.totalorder %s18, 1
        %s244 = scalar_select %p243, %s18, 1
        %p245 = scmp.lt.s32.totalorder %s242, 0
        %s246 = scalar_select %p245, %s242, 0
        %s247 = sadd.s32 %s246, %s244
        %s248 = smul.addr %s247, 8
        %s249 = scalar_lea.vmem %s1, %s248
        %s250 = sadd.s32 %s19, %s20
      $region24: #{east_loss.1} parent=15 // pred_fallthru
        _
      // Predicated region
      $region25: #{east_loss.1} parent=15 // pred_check
        %p251 = pneg %p114
      $region26: #{east_loss.1} parent=15 // pred_check_branch
        %253 = sbr.rel (%p251) target = $region28
      $region27: #{east_loss.1} parent=15 // pred_region
        %s254 = sadd.s32 %s19, %s20
        %p255 = scmp.lt.s32.totalorder %s18, 1
        %s256 = scalar_select %p255, %s18, 1
        %p257 = scmp.lt.s32.totalorder %s254, 0
        %s258 = scalar_select %p257, %s254, 0
        %s259 = sadd.s32 %s258, %s256
        %s260 = smul.addr %s259, 8
        %s261 = scalar_lea.vmem %s2, %s260
        %s262 = sadd.s32 %s19, %s20
      $region28: #{east_loss.1} parent=15 // pred_fallthru
        _
      // Predicated region
      $region29: #{east_loss.1} parent=15 // pred_check
        %p263 = pneg %p144
      $region30: #{east_loss.1} parent=15 // pred_check_branch
        %265 = sbr.rel (%p263) target = $region32
      $region31: #{east_loss.1} parent=15 // pred_region
        %s266 = sadd.s32 %s19, %s20
        %p267 = scmp.lt.s32.totalorder %s18, 1
        %s268 = scalar_select %p267, %s18, 1
        %p269 = scmp.lt.s32.totalorder %s266, 0
        %s270 = scalar_select %p269, %s266, 0
        %s271 = smul.addr %s268, 5
        %s272 = sadd.s32 %s270, %s271
        %s273 = smul.addr %s272, 8
        %s274 = scalar_lea.vmem %s3, %s273
        %s275 = sadd.s32 %s19, %s20
      $region32: #{east_loss.1} parent=15 // pred_fallthru
        _
      // Predicated region
      $region33: #{east_loss.1} parent=15 // pred_check
        %p276 = pneg %p174
      $region34: #{east_loss.1} parent=15 // pred_check_branch
        %278 = sbr.rel (%p276) target = $region36
      $region35: #{east_loss.1} parent=15 // pred_region
        %s279 = sadd.s32 %s19, %s20
        %p280 = scmp.lt.s32.totalorder %s18, 1
        %s281 = scalar_select %p280, %s18, 1
        %p282 = scmp.lt.s32.totalorder %s279, 0
        %s283 = scalar_select %p282, %s279, 0
        %s284 = smul.addr %s281, 5
        %s285 = sadd.s32 %s283, %s284
        %s286 = smul.addr %s285, 8
        %s287 = scalar_lea.vmem %s4, %s286
        %s288 = sadd.s32 %s19, %s20
      $region36: #{east_loss.1} parent=15 // pred_fallthru
        _
    $region16: #{east_loss.1} parent=5 // pred_fallthru
      _
    %p289 = scmp.le.s32.totalorder 1, %s11
    %p290 = scmp.lt.s32.totalorder %s11, 3
    %p291 = pnand %p289, %p290
    %p292 = pneg %p291
    // Predicated region
    $region37: #{east_loss.1} parent=5 // pred_check
      _
    $region38: #{east_loss.1} parent=5 // pred_check_branch
      %294 = sbr.rel (%p291) target = $region40
    $region39: #{east_loss.1} parent=5 // pred_region
      %s295 = ssub.s32 %s11, 1
      %s296 = sadd.s32 %s22, %s23
      %p297 = scmp.lt.s32.totalorder %s21, 1
      %s298 = scalar_select %p297, %s21, 1
      %p299 = scmp.lt.s32.totalorder %s296, 0
      %s300 = scalar_select %p299, %s296, 0
      %s301 = sadd.s32 %s300, %s298
      %s302 = smul.addr %s301, 8
      %s303 = scalar_lea.vmem %s0, %s302
      %p304 = pneg %p60
      %p305 = pneg %p57
      %s306 = sadd.s32 %s22, %s23
      %p307 = scmp.lt.s32.totalorder %s21, 1
      %s308 = scalar_select %p307, %s21, 1
      %p309 = scmp.lt.s32.totalorder %s306, 0
      %s310 = scalar_select %p309, %s306, 0
      %s311 = sadd.s32 %s310, %s308
      %s312 = smul.addr %s311, 8
      %s313 = scalar_lea.vmem %s1, %s312
      %p314 = pneg %p90
      %p315 = pneg %p87
      %s316 = sadd.s32 %s22, %s23
      %p317 = scmp.lt.s32.totalorder %s21, 1
      %s318 = scalar_select %p317, %s21, 1
      %p319 = scmp.lt.s32.totalorder %s316, 0
      %s320 = scalar_select %p319, %s316, 0
      %s321 = sadd.s32 %s320, %s318
      %s322 = smul.addr %s321, 8
      %s323 = scalar_lea.vmem %s2, %s322
      %p324 = pneg %p120
      %p325 = pneg %p117
      %s326 = sadd.s32 %s22, %s23
      %p327 = scmp.lt.s32.totalorder %s21, 1
      %s328 = scalar_select %p327, %s21, 1
      %p329 = scmp.lt.s32.totalorder %s326, 0
      %s330 = scalar_select %p329, %s326, 0
      %s331 = smul.addr %s328, 5
      %s332 = sadd.s32 %s330, %s331
      %s333 = smul.addr %s332, 8
      %s334 = scalar_lea.vmem %s3, %s333
      %p335 = pneg %p150
      %p336 = pneg %p147
      %s337 = sadd.s32 %s22, %s23
      %p338 = scmp.lt.s32.totalorder %s21, 1
      %s339 = scalar_select %p338, %s21, 1
      %p340 = scmp.lt.s32.totalorder %s337, 0
      %s341 = scalar_select %p340, %s337, 0
      %s342 = smul.addr %s339, 5
      %s343 = sadd.s32 %s341, %s342
      %s344 = smul.addr %s343, 8
      %s345 = scalar_lea.vmem %s4, %s344
      %p346 = pneg %p180
      %p347 = pneg %p177
      %p348 = pneg %p208
      %p349 = pneg %p205
      %p350 = scmp.lt.s32.totalorder %s21, 1
      %s351 = scalar_select %p350, %s21, 1
      %p352 = scmp.lt.s32.totalorder %s22, 0
      %s353 = scalar_select %p352, %s22, 0
      %s354 = sadd.s32 %s353, %s351
      %s355 = smul.addr %s354, 8
      %s356 = scalar_lea.vmem %s5, %s355
      %s357 = sadd.s32 %s22, %s23
      %p358 = scmp.lt.s32.totalorder %s21, 1
      %s359 = scalar_select %p358, %s21, 1
      %p360 = scmp.lt.s32.totalorder %s357, 0
      %s361 = scalar_select %p360, %s357, 0
      %s362 = sadd.s32 %s361, %s359
      %s363 = smul.addr %s362, 8
      %s364 = scalar_lea.vmem %s0, %s363
      %s365 = sadd.s32 %s22, %s23
      %s366 = sadd.s32 %s22, %s23
      %p367 = scmp.lt.s32.totalorder %s21, 1
      %s368 = scalar_select %p367, %s21, 1
      %p369 = scmp.lt.s32.totalorder %s366, 0
      %s370 = scalar_select %p369, %s366, 0
      %s371 = sadd.s32 %s370, %s368
      %s372 = smul.addr %s371, 8
      %s373 = scalar_lea.vmem %s1, %s372
      %s374 = sadd.s32 %s22, %s23
      %s375 = sadd.s32 %s22, %s23
      %p376 = scmp.lt.s32.totalorder %s21, 1
      %s377 = scalar_select %p376, %s21, 1
      %p378 = scmp.lt.s32.totalorder %s375, 0
      %s379 = scalar_select %p378, %s375, 0
      %s380 = sadd.s32 %s379, %s377
      %s381 = smul.addr %s380, 8
      %s382 = scalar_lea.vmem %s2, %s381
      %s383 = sadd.s32 %s22, %s23
      %s384 = sadd.s32 %s22, %s23
      %p385 = scmp.lt.s32.totalorder %s21, 1
      %s386 = scalar_select %p385, %s21, 1
      %p387 = scmp.lt.s32.totalorder %s384, 0
      %s388 = scalar_select %p387, %s384, 0
      %s389 = smul.addr %s386, 5
      %s390 = sadd.s32 %s388, %s389
      %s391 = smul.addr %s390, 8
      %s392 = scalar_lea.vmem %s3, %s391
      %s393 = sadd.s32 %s22, %s23
      %s394 = sadd.s32 %s22, %s23
      %p395 = scmp.lt.s32.totalorder %s21, 1
      %s396 = scalar_select %p395, %s21, 1
      %p397 = scmp.lt.s32.totalorder %s394, 0
      %s398 = scalar_select %p397, %s394, 0
      %s399 = smul.addr %s396, 5
      %s400 = sadd.s32 %s398, %s399
      %s401 = smul.addr %s400, 8
      %s402 = scalar_lea.vmem %s4, %s401
      %s403 = sadd.s32 %s22, %s23
      %p404 = scmp.lt.s32.totalorder %s21, 1
      %s405 = scalar_select %p404, %s21, 1
      %p406 = scmp.lt.s32.totalorder %s22, 0
      %s407 = scalar_select %p406, %s22, 0
      %s408 = sadd.s32 %s407, %s405
      %s409 = smul.addr %s408, 8
      %s410 = scalar_lea.vmem %s5, %s409
      %p411 = scmp.eq.s32.totalorder %s23, 0
      // Predicated region
      $region41: #{east_loss.1} parent=39 // pred_check
        %p412 = pneg %p411
      $region42: #{east_loss.1} parent=39 // pred_check_branch
        %414 = sbr.rel (%p412) target = $region44
      $region43: #{east_loss.1} parent=39 // pred_region
        %415 = vst [vmem:[#allocation2] sm:$0xff] 0.0
        %416 = vst [vmem:[#allocation2 + $0x8] sm:$0xff] 0.0
        %417 = vst [vmem:[#allocation2 + $0x10] sm:$0xff] 0.0
        %418 = vst [vmem:[#allocation2 + $0x18] sm:$0xff] 0.0
        %419 = vst [vmem:[#allocation2 + $0x20] sm:$0xff] 0.0
      $region44: #{east_loss.1} parent=39 // pred_fallthru
        _
      %v420 = vld [vmem:[%s364] sm:$0xff]
      %v421 = vld [vmem:[%s373] sm:$0xff]
      %v422 = vld [vmem:[%s382] sm:$0xff]
      %v423 = vsub.f32 1.0, %v422
      %v424 = vmul.f32 %v421, %v423
      %v425 = vld [vmem:[%s392] sm:$0xff]
      %s426 = scalar_lea.vmem %s392, 8
      %v427 = vld [vmem:[%s426] sm:$0xff]
      %s428 = scalar_lea.vmem %s392, 16
      %v429 = vld [vmem:[%s428] sm:$0xff]
      %s430 = scalar_lea.vmem %s392, 24
      %v431 = vld [vmem:[%s430] sm:$0xff]
      %s432 = scalar_lea.vmem %s392, 32
      %v433 = vld [vmem:[%s432] sm:$0xff]
      %v434 = vld [vmem:[%s402] sm:$0xff]
      %s435 = scalar_lea.vmem %s402, 8
      %v436 = vld [vmem:[%s435] sm:$0xff]
      %s437 = scalar_lea.vmem %s402, 16
      %v438 = vld [vmem:[%s437] sm:$0xff]
      %s439 = scalar_lea.vmem %s402, 24
      %v440 = vld [vmem:[%s439] sm:$0xff]
      %s441 = scalar_lea.vmem %s402, 32
      %v442 = vld [vmem:[%s441] sm:$0xff]
      %v443 = vadd.f32 %v425, %v427
      %v444 = vadd.f32 %v429, %v431
      %v445 = vmul.f32 %v443, %v444
      %v446 = vadd.f32 %v434, %v436
      %v447 = vadd.f32 %v438, %v440
      %v448 = vmul.f32 %v446, %v447
      %v449 = vmin.f32 %v429, %v438
      %v450 = vmin.f32 %v431, %v440
      %v451 = vadd.f32 %v449, %v450
      %v452 = vmin.f32 %v425, %v434
      %v453 = vmin.f32 %v427, %v436
      %v454 = vadd.f32 %v452, %v453
      %v455 = vmul.f32 %v451, %v454
      %v456 = vadd.f32 %v445, %v448
      %v457 = vsub.f32 %v456, %v455
      %v458 = vadd.f32 %v455, 1.0
      %v459 = vadd.f32 %v457, 1.0
      %v460 = vrcp.pop %v459
      %v461 = vmul.f32 %v459, %v460
      %v462 = vsub.f32 1.0, %v461
      %v463 = vmul.f32 %v460, %v462
      %v464 = vadd.f32 %v460, %v463
      %vm465 = vweird.f32 %v459
      %vm466 = vweird.f32 %v460
      %vm467 = vmor %vm465, %vm466
      %v468 = vsel %vm467, %v460, %v464
      %v469 = vand.u32 2147483647, %v459
      %vm470 = vcmp.eq.f32.partialorder %v469, 8.507059e+37
      %v471 = vand.u32 %v459, 2147483648
      %v472 = vor.u32 1.1754944e-38, %v471
      %v473 = vsel %vm470, %v472, %v468
      %v474 = vmul.f32 %v458, %v473
      %v475 = vlog2.pop %v474
      %v476 = vmul.f32 %v475, 0.6931472
      %v477 = vsub.f32 0.0, %v476
      %v478 = vsub.f32 %v442, %v433
      %v479 = vand.u32 2147483647, %v478
      %vm480 = vcmp.le.f32.partialorder %v479, 0.7853982
      %vm481 = vcmp.lt.s32.totalorder %v478, 0
      %v482 = vand.u32 %v478, 2139095040
      %v483 = vshrl.u32 %v482, 23
      %v484 = vsub.s32 %v483, 127
      %v485 = vand.u32 2147483647, %v478
      %v486 = vand.u32 %v485, 8388607
      %v487 = vor.u32 %v486, 8388608
      %v488 = vsub.s32 0, %v487
      %v489 = vadd.s32 %v484, 1
      %vm490 = vcmp.gt.s32.totalorder %v489, 0
      %v491 = vsel %vm490, %v489, 0
      %v492 = vshrl.u32 %v491, 5
      %v493 = vand.u32 %v491, 31
      %v494 = vsub.s32 32, %v493
      %v495 = vshrl.u32 683565275, %v494
      %v496 = vshll.u32 683565275, %v493
      %v497 = vshrl.u32 2475754826, %v494
      %v498 = vor.u32 %v496, %v497
      %v499 = vshll.u32 2475754826, %v493
      %v500 = vshrl.u32 2131351028, %v494
      %v501 = vor.u32 %v499, %v500
      %v502 = vshll.u32 2131351028, %v493
      %v503 = vshrl.u32 2102212464, %v494
      %v504 = vor.u32 %v502, %v503
      %v505 = vshll.u32 2102212464, %v493
      %v506 = vshrl.u32 920167782, %v494
      %v507 = vor.u32 %v505, %v506
      %v508 = vshll.u32 920167782, %v493
      %v509 = vshrl.u32 1326507024, %v494
      %v510 = vor.u32 %v508, %v509
      %vm511 = vcmp.lt.s32.totalorder %v492, 1
      %vm512 = vcmp.lt.s32.totalorder %v492, 2
      %vm513 = vcmp.lt.s32.totalorder %v492, 3
      %vm514 = vcmp.lt.s32.totalorder %v492, 4
      %v515 = vsel %vm511, %v495, %v498
      %v516 = vsel %vm514, %v504, 2102212464
      %v517 = vsel %vm513, %v501, %v516
      %v518 = vsel %vm512, %v515, %v517
      %v519 = vsel %vm511, %v498, %v501
      %v520 = vsel %vm514, %v507, 920167782
      %v521 = vsel %vm513, %v504, %v520
      %v522 = vsel %vm512, %v519, %v521
      %v523 = vsel %vm511, %v501, %v504
      %v524 = vsel %vm514, %v510, 1326507024
      %v525 = vsel %vm513, %v507, %v524
      %v526 = vsel %vm512, %v523, %v525
      %v527 = vshll.u32 %v487, 8
      %v528 = vand.u32 %v527, 65535
      %v529 = vshrl.u32 %v527, 16
      %v530 = vand.u32 %v526, 65535
      %v531 = vshrl.u32 %v526, 16
      %v532 = vmul.u32 %v528, %v530
      %v533 = vmul.u32 %v528, %v531
      %v534 = vmul.u32 %v529, %v530
      %v535 = vmul.u32 %v529, %v531
      %v536 = vshll.u32 %v533, 16
      %v537 = vshrl.u32 %v533, 16
      %v538 = vshll.u32 %v534, 16
      %v539 = vshrl.u32 %v534, 16
      %vm540 = vc.u32 %v532, %v536
      %v541 = vsel %vm540, 1, 0
      %v542 = vadd.s32 %v532, %v536
      %v543 = vadd.s32 %v535, %v541
      %vm544 = vc.u32 %v542, %v538
      %v545 = vsel %vm544, 1, 0
      %v546 = vadd.s32 %v542, %v538
      %v547 = vadd.s32 %v543, %v545
      %v548 = vadd.s32 %v547, %v537
      %v549 = vadd.s32 %v548, %v539
      %v550 = vand.u32 %v527, 65535
      %v551 = vshrl.u32 %v527, 16
      %v552 = vand.u32 %v522, 65535
      %v553 = vshrl.u32 %v522, 16
      %v554 = vmul.u32 %v550, %v552
      %v555 = vmul.u32 %v550, %v553
      %v556 = vmul.u32 %v551, %v552
      %v557 = vmul.u32 %v551, %v553
      %v558 = vshll.u32 %v555, 16
      %v559 = vshrl.u32 %v555, 16
      %v560 = vshll.u32 %v556, 16
      %v561 = vshrl.u32 %v556, 16
      %vm562 = vc.u32 %v554, %v558
      %v563 = vsel %vm562, 1, 0
      %v564 = vadd.s32 %v554, %v558
      %v565 = vadd.s32 %v557, %v563
      %vm566 = vc.u32 %v564, %v560
      %v567 = vsel %vm566, 1, 0
      %v568 = vadd.s32 %v564, %v560
      %v569 = vadd.s32 %v565, %v567
      %v570 = vadd.s32 %v569, %v559
      %v571 = vadd.s32 %v570, %v561
      %v572 = vmul.u32 %v527, %v518
      %v573 = vadd.s32 %v549, %v568
      %vm574 = vc.u32 %v549, %v568
      %v575 = vadd.s32 %v571, 1
      %v576 = vsel %vm574, %v575, %v571
      %v577 = vadd.s32 %v572, %v576
      %v578 = vadd.s32 %v577, 536870912
      %v579 = vshrl.u32 %v578, 30
      %v580 = vshll.u32 %v579, 30
      %v581 = vsub.s32 %v577, %v580
      %vm582 = vcmp.lt.s32.totalorder %v581, 0
      %v583 = vsub.s32 0, %v581
      %v584 = vsel %vm582, %v583, %v581
      %v585 = vclz %v584
      %v586 = vsub.s32 %v585, 2
      %vm587 = vcmp.gt.s32.totalorder 0, %v586
      %v588 = vsel %vm587, 0, %v586
      %v589 = vsub.s32 32, %v588
      %v590 = vshll.u32 %v581, %v588
      %v591 = vshrl.u32 %v573, %v589
      %v592 = vor.u32 %v590, %v591
      %v593 = vsub.s32 4294967266, %v588
      %v594 = vadd.s32 %v593, 127
      %v595 = vshll.u32 %v594, 23
      %v596 = vor.u32 4788187, %v595
      %v597 = vand.u32 2147483647, %v596
      %v599 = vcvt.s32.f32 %v592
      %v600 = vmul.f32 %v599, %v597
      %v601 = vxor.u32 %v600, 2147483648
      %v602 = vsel %vm481, %v601, %v600
      %v603 = vsub.s32 4, %v579
      %v604 = vsel %vm481, %v603, %v579
      %v605 = vsel %vm480, %v478, %v602
      %v606 = vsel %vm480, 0, %v604
      %v607 = vmul.f32 %v605, %v605
      %v608 = vmul.f32 %v607, -0.001358992
      %v609 = vadd.f32 %v608, 0.041655596
      %v610 = vmul.f32 %v607, %v609
      %v611 = vadd.f32 %v610, -0.4999988
      %v612 = vmul.f32 %v607, %v611
      %v613 = vadd.f32 1.0, %v612
      %v614 = vmul.f32 %v605, %v605
      %v615 = vmul.f32 %v614, -0.00019511016
      %v616 = vadd.f32 %v615, 0.008332121
      %v617 = vmul.f32 %v614, %v616
      %v618 = vadd.f32 %v617, -0.16666654
      %v619 = vmul.f32 %v614, %v618
      %v620 = vadd.f32 %v619, 1.0
      %v621 = vmul.f32 %v620, %v605
      %vm622 = vweird.f32 %v478
      %v623 = vand.u32 %v606, 3
      %vm624 = vcmp.lt.s32.totalorder %v623, 2
      %vm625 = vcmp.eq.s32.totalorder %v623, 0
      %v626 = vxor.u32 %v621, 2147483648
      %v627 = vsel %vm625, %v613, %v626
      %vm628 = vcmp.eq.s32.totalorder %v623, 2
      %v629 = vxor.u32 %v613, 2147483648
      %v630 = vsel %vm628, %v629, %v621
      %v631 = vsel %vm624, %v627, %v630
      %v632 = vsel %vm622, nan, %v631
      %v633 = vsub.f32 1.0, %v632
      %v634 = vld [vmem:[#allocation2] sm:$0xff]
      %v635 = vadd.f32 %v420, 0.0
      %v636 = vadd.f32 %v634, %v635
      %637 = vst [vmem:[#allocation2] sm:$0xff] %v636
      %s638 = scalar_lea.vmem [#allocation2], 8
      %v639 = vld [vmem:[%s638] sm:$0xff]
      %v640 = vmul.f32 %v424, %v420
      %v641 = vadd.f32 %v640, 0.0
      %v642 = vadd.f32 %v639, %v641
      %643 = vst [vmem:[%s638] sm:$0xff] %v642
      %s644 = scalar_lea.vmem [#allocation2], 16
      %v645 = vld [vmem:[%s644] sm:$0xff]
      %v646 = vadd.f32 %v424, 0.0
      %v647 = vadd.f32 %v645, %v646
      %648 = vst [vmem:[%s644] sm:$0xff] %v647
      %s649 = scalar_lea.vmem [#allocation2], 24
      %v650 = vld [vmem:[%s649] sm:$0xff]
      %v651 = vmul.f32 %v633, %v420
      %v652 = vadd.f32 %v651, 0.0
      %v653 = vadd.f32 %v650, %v652
      %654 = vst [vmem:[%s649] sm:$0xff] %v653
      %s655 = scalar_lea.vmem [#allocation2], 32
      %v656 = vld [vmem:[%s655] sm:$0xff]
      %v657 = vmul.f32 %v477, %v420
      %v658 = vadd.f32 %v657, 0.0
      %v659 = vadd.f32 %v656, %v658
      %660 = vst [vmem:[%s655] sm:$0xff] %v659
      // Predicated region
      $region45: #{east_loss.1} parent=39 // pred_check
        %p661 = pneg %p411
      $region46: #{east_loss.1} parent=39 // pred_check_branch
        %663 = sbr.rel (%p661) target = $region48
      $region47: #{east_loss.1} parent=39 // pred_region
        %v664 = vld [vmem:[#allocation2] sm:$0xff]
        %v665 = vld [vmem:[#allocation2 + $0x8] sm:$0xff]
        %v666 = vld [vmem:[#allocation2 + $0x10] sm:$0xff]
        %v667 = vld [vmem:[#allocation2 + $0x18] sm:$0xff]
        %v668 = vld [vmem:[#allocation2 + $0x20] sm:$0xff]
        %v669 = vrot.slane %v664, 4
        %v670 = vadd.f32 %v664, %v669
        %v671 = vrot.slane %v670, 2
        %v672 = vadd.f32 %v670, %v671
        %v673 = vrot.slane %v672, 1
        %v674 = vadd.f32 %v672, %v673
        %v675 = vrot.slane %v665, 4
        %v676 = vadd.f32 %v665, %v675
        %v677 = vrot.slane %v676, 2
        %v678 = vadd.f32 %v676, %v677
        %v679 = vrot.slane %v678, 1
        %v680 = vadd.f32 %v678, %v679
        %v681 = vrot.slane %v666, 4
        %v682 = vadd.f32 %v666, %v681
        %v683 = vrot.slane %v682, 2
        %v684 = vadd.f32 %v682, %v683
        %v685 = vrot.slane %v684, 1
        %v686 = vadd.f32 %v684, %v685
        %v687 = vrot.slane %v667, 4
        %v688 = vadd.f32 %v667, %v687
        %v689 = vrot.slane %v688, 2
        %v690 = vadd.f32 %v688, %v689
        %v691 = vrot.slane %v690, 1
        %v692 = vadd.f32 %v690, %v691
        %v693 = vrot.slane %v668, 4
        %v694 = vadd.f32 %v668, %v693
        %v695 = vrot.slane %v694, 2
        %v696 = vadd.f32 %v694, %v695
        %v697 = vrot.slane %v696, 1
        %v698 = vadd.f32 %v696, %v697
        %vm704 = vcmask 1041409
        %v705 = vsel %vm704, %v680, %v674
        %vm706 = vcmask 1042434
        %v707 = vsel %vm706, %v686, %v705
        %vm708 = vcmask 1043459
        %v709 = vsel %vm708, %v692, %v707
        %vm710 = vcmask 1044484
        %v711 = vsel %vm710, %v698, %v709
        %713 = vst [vmem:[%s410] sm:$0x1f] %v711
      $region48: #{east_loss.1} parent=39 // pred_fallthru
        _
      %p714 = scmp.lt.s32.totalorder %s21, 1
      %s715 = scalar_select %p714, %s21, 1
      %p716 = scmp.lt.s32.totalorder %s22, 0
      %s717 = scalar_select %p716, %s22, 0
      %s718 = sadd.s32 %s717, %s715
      %s719 = smul.addr %s718, 8
      %s720 = scalar_lea.vmem %s5, %s719
      // Predicated region
      $region49: #{east_loss.1} parent=39 // pred_check
        %p721 = pneg %p205
      $region50: #{east_loss.1} parent=39 // pred_check_branch
        %723 = sbr.rel (%p721) target = $region52
      $region51: #{east_loss.1} parent=39 // pred_region
        _
      $region52: #{east_loss.1} parent=39 // pred_fallthru
        _
    $region40: #{east_loss.1} parent=5 // pred_fallthru
      _
    %p724 = scmp.le.s32.totalorder 2, %s11
    // Predicated region
    $region53: #{east_loss.1} parent=5 // pred_check
      %p725 = pneg %p724
    $region54: #{east_loss.1} parent=5 // pred_check_branch
      %727 = sbr.rel (%p725) target = $region56
    $region55: #{east_loss.1} parent=5 // pred_region
      %s728 = ssub.s32 %s11, 2
      // Predicated region
      $region57: #{east_loss.1} parent=55 // pred_check
        %p729 = pneg %p211
      $region58: #{east_loss.1} parent=55 // pred_check_branch
        %731 = sbr.rel (%p729) target = $region60
      $region59: #{east_loss.1} parent=55 // pred_region
        %p732 = scmp.lt.s32.totalorder %s24, 1
        %s733 = scalar_select %p732, %s24, 1
        %p734 = scmp.lt.s32.totalorder %s25, 0
        %s735 = scalar_select %p734, %s25, 0
        %s736 = sadd.s32 %s735, %s733
        %s737 = smul.addr %s736, 8
        %s738 = scalar_lea.vmem %s5, %s737
      $region60: #{east_loss.1} parent=55 // pred_fallthru
        _
    $region56: #{east_loss.1} parent=5 // pred_fallthru
      _
  $region6: #{east_loss.1} parent=0 // loop_footer
    %s15 = sadd.s32 1, %s11
  $region7: #{east_loss.1} parent=0 // loop_footer_branch
    %10 = sbr.rel target = $region3
  $region8: #{east_loss.1} parent=0 // loop_exit
    _

</llo_original>
